<compile_context>
chip_gen: v7x
topology: tpu7x:2x2x1
jax: 0.10.0
libtpu: 0.0.40
codegen_flags: <defaults>
</compile_context>

<pallas_src>
import math

import jax
import jax.numpy as jnp
import numpy as np
from jax.experimental import pallas as pl
from jax.experimental.pallas import tpu as pltpu

HIDDEN_DIM = 128          # hidden_dim == feat_dim == att_hid_dim
BS = 2
SEQ = 16                  # A (number of features per sample)
MASK_FILL = -1e9          # matches masked_fill(..., -1000000000.0)


# ================================ kernel =====================================

def _attentive_pool_kernel(feats_ref, wcat_ref, vecs_ref, mask_ref,
                           attf_ref, attw_ref):
    TB, A, D = feats_ref.shape
    H = attf_ref.shape[1]

    x2 = feats_ref[...].reshape(TB * A, D)                       # (TB*A, D) f32

    # Single fused MXU pass: (TB*A, D) @ (D, 2H) -> (TB*A, 2H), bf16 operands,
    # f32 accumulation.  Columns [:H] feed the attention branch, [H:] is the
    # fc-projected feature stream that gets pooled.
    y = jnp.dot(x2.astype(jnp.bfloat16), wcat_ref[...],
                preferred_element_type=jnp.float32)
    y = y.reshape(TB, A, 2 * H)
    h = jnp.tanh(y[..., :H])                                     # (TB, A, H) f32
    y_fc = y[..., H:]                                            # (TB, A, H) f32

    vecs = vecs_ref[...]                                         # (2, H) f32
    w_alpha = vecs[0:1, :].reshape(1, 1, H)                      # to_alpha weight
    b_fc = vecs[1:2, :]                                          # fc bias (1, H)

    # to_alpha (att_n == 1): lane-dense broadcast-mul + lane reduce instead of
    # a 1-wide matmul.
    alpha = jnp.sum(h * w_alpha, axis=-1)                        # (TB, A)

    # key mask: positions with mask == 0 are invalid.
    alpha = jnp.where(mask_ref[...] == 0.0, MASK_FILL, alpha)

    # softmax over A (exact reciprocal — approx saves nothing at this size)
    m = jnp.max(alpha, axis=-1, keepdims=True)
    e = jnp.exp(alpha - m)
    s = jnp.sum(e, axis=-1, keepdims=True)
    attw = e / s                                                 # (TB, A)

    # Pool the fc-projected stream: VPU mul + sublane reduce over A, then bias.
    out = jnp.sum(attw[:, :, None] * y_fc, axis=1) + b_fc        # (TB, H)

    attf_ref[...] = out.astype(attf_ref.dtype)
    # TODO(synk): if A ever grows past 128, pad/emit attw lane-dense so the
    # store is an unmasked vst; irrelevant at A=16.
    attw_ref[...] = attw.astype(attw_ref.dtype)


def attentive_pooling(fused, feats, f_masks=None):
    """feats: (B, A, D) or (B, W, H, D);  f_masks: (B, A) (1=valid, 0=pad)."""
    if feats.ndim == 4:
        b, w, h, d = feats.shape
        feats = feats.reshape(b, w * h, d)
    B, A, D = feats.shape
    H = fused["vecs"].shape[1]

    if f_masks is None:
        mask = jnp.ones((B, A), jnp.float32)
    else:
        mask = f_masks.astype(jnp.float32)

    # Batch tile: whole batch in one step when tiny; shard across TCs (v7x)
    # for realistic batch sizes.
    TB = B if B <= 8 else 8
    grid = (pl.cdiv(B, TB),)

    # TODO(synk): for the 4-D (B, W, H, D) path with large A = W*H, tile A in
    # the grid (two-pass / online softmax) or set vmem_limit_bytes — a
    # full-(A) block that fits v5e/v6e's 128 MiB VMEM can exceed v7x's 64 MiB.
    att_feats, attw = pl.pallas_call(
        _attentive_pool_kernel,
        out_shape=(jax.ShapeDtypeStruct((B, H), jnp.float32),
                   jax.ShapeDtypeStruct((B, A), jnp.float32)),
        grid=grid,
        in_specs=[
            pl.BlockSpec((TB, A, D), lambda i: (i, 0, 0)),   # feats
            pl.BlockSpec((D, 2 * H), lambda i: (0, 0)),      # [w_feat2att | w_fc] bf16
            pl.BlockSpec((2, H), lambda i: (0, 0)),          # [w_to_alpha ; b_fc]
            pl.BlockSpec((TB, A), lambda i: (i, 0)),         # mask
        ],
        out_specs=(pl.BlockSpec((TB, H), lambda i: (i, 0)),
                   pl.BlockSpec((TB, A), lambda i: (i, 0))),
        compiler_params=pltpu.CompilerParams(
            dimension_semantics=("parallel",)),
    )(feats, fused["w_cat"], fused["vecs"], mask)
    return att_feats, attw


# ============================ pure-JAX reference =============================

def attentive_pooling_ref(params, feats, f_masks=None):
    if feats.ndim == 4:
        b, w, h, d = feats.shape
        feats = feats.reshape(b, w * h, d)
    attn_f = feats @ params["w_feat2att"]
    dot = jnp.tanh(attn_f)
    alpha = dot @ params["w_to_alpha"].T                  # (B, A, 1)
    if f_masks is not None:
        alpha = jnp.where(f_masks[..., None].astype(jnp.float32) == 0.0,
                          MASK_FILL, alpha)
    attw = jax.nn.softmax(jnp.swapaxes(alpha, 1, 2), axis=2)   # (B, 1, A)
    att = (attw @ feats)[:, 0]                             # (B, D)
    attw = attw[:, 0]                                      # (B, A)
    att = att @ params["w_fc"] + params["b_fc"]
    return att, attw


# ============================== parameter init ===============================

def init_params(seed=0, hidden_dim=HIDDEN_DIM):
    k1, k2, k3, k4 = jax.random.split(jax.random.PRNGKey(seed), 4)
    bound = 1.0 / math.sqrt(hidden_dim)       # PyTorch default Linear init bound
    return {
        # stored (in, out) so forward is x @ W
        "w_feat2att": jax.random.uniform(k1, (hidden_dim, hidden_dim),
                                         jnp.float32, -bound, bound),
        # to_alpha weight is (att_n=1, H) in PyTorch; kept as a (1, H) row.
        "w_to_alpha": jax.random.uniform(k2, (1, hidden_dim),
                                         jnp.float32, -bound, bound),
        "w_fc": jax.random.uniform(k3, (hidden_dim, hidden_dim),
                                   jnp.float32, -bound, bound),
        "b_fc": jax.random.uniform(k4, (hidden_dim,),
                                   jnp.float32, -bound, bound),
    }


def fuse_params(params):
    """One-time prep: concat the two big weights (bf16 MXU operands) and stack
    the two (1, H) vectors into a single input window."""
    H = params["w_feat2att"].shape[1]
    w_cat = jnp.concatenate([params["w_feat2att"], params["w_fc"]],
                            axis=1).astype(jnp.bfloat16)            # (D, 2H)
    vecs = jnp.concatenate([params["w_to_alpha"],
                            params["b_fc"].reshape(1, H)], axis=0)   # (2, H) f32
    return {"w_cat": w_cat, "vecs": vecs}


# ==================================== main ===================================

if __name__ == "__main__":
    params = init_params(0)
    fused = fuse_params(params)

    key = jax.random.PRNGKey(0)
    kf, _ = jax.random.split(key)
    feats = jax.random.normal(kf, (BS, SEQ, HIDDEN_DIM), jnp.float32)
    # mask: 1 = valid, 0 = padded.  Last 3 positions of batch 1 are padded.
    f_masks = jnp.ones((BS, SEQ), jnp.float32).at[1, -3:].set(0.0)

    fwd = jax.jit(attentive_pooling)
    att_feats, attw = fwd(fused, feats, f_masks)
    jax.block_until_ready((att_feats, attw))

    # shape / sanity checks against the pure-JAX f32 reference
    ref_feats, ref_attw = attentive_pooling_ref(params, feats, f_masks)
    assert att_feats.shape == (BS, HIDDEN_DIM), att_feats.shape
    assert attw.shape == (BS, SEQ), attw.shape
    assert bool(jnp.isfinite(att_feats).all())
    assert bool(jnp.isfinite(attw).all())
    # bf16 MXU operands -> ~1e-2 tolerance vs. the f32 reference
    np.testing.assert_allclose(np.asarray(attw), np.asarray(ref_attw),
                               rtol=1e-2, atol=1e-2)
    np.testing.assert_allclose(np.asarray(att_feats), np.asarray(ref_feats),
                               rtol=1e-2, atol=1e-2)
    # masked positions must receive ~zero attention
    assert float(jnp.max(attw[1, -3:])) < 1e-6

    print("KERNEL_OK")
</pallas_src>

<mosaic_0001>
module attributes {stable_mosaic.version = 11 : i64} {
  func.func @_attentive_pool_kernel(%arg0: i32, %arg1: memref<2x16x128xf32, #tpu.memory_space<vmem>>, %arg2: memref<128x256xbf16, #tpu.memory_space<vmem>>, %arg3: memref<2x128xf32, #tpu.memory_space<vmem>>, %arg4: memref<2x16xf32, #tpu.memory_space<vmem>>, %arg5: memref<2x128xf32, #tpu.memory_space<vmem>>, %arg6: memref<2x16xf32, #tpu.memory_space<vmem>>) attributes {dimension_semantics = [#tpu.dimension_semantics<parallel>], iteration_bounds = array<i64: 1>, scalar_prefetch = 0 : i64, scratch_operands = 0 : i64, tpu.core_type = #tpu.core_type<tc>, window_params = [{transform_indices = @transform_0, window_bounds = array<i64: 2, 16, 128>}, {pipeline_mode = #tpu.pipeline_mode<synchronous>, transform_indices = @transform_1, window_bounds = array<i64: 128, 256>}, {pipeline_mode = #tpu.pipeline_mode<synchronous>, transform_indices = @transform_2, window_bounds = array<i64: 2, 128>}, {transform_indices = @transform_3, window_bounds = array<i64: 2, 16>}, {transform_indices = @transform_4, window_bounds = array<i64: 2, 128>}, {transform_indices = @transform_5, window_bounds = array<i64: 2, 16>}]} {
    %c0 = arith.constant 0 : index
    %c0_0 = arith.constant 0 : index
    %c0_1 = arith.constant 0 : index
    %0 = vector.load %arg1[%c0, %c0_0, %c0_1] : memref<2x16x128xf32, #tpu.memory_space<vmem>>, vector<2x16x128xf32>
    %1 = vector.shape_cast %0 : vector<2x16x128xf32> to vector<32x128xf32>
    %2 = arith.truncf %1 : vector<32x128xf32> to vector<32x128xbf16>
    %c0_2 = arith.constant 0 : index
    %c0_3 = arith.constant 0 : index
    %3 = vector.load %arg2[%c0_2, %c0_3] : memref<128x256xbf16, #tpu.memory_space<vmem>>, vector<128x256xbf16>
    %cst = arith.constant dense<0.000000e+00> : vector<32x256xf32>
    %4 = tpu.matmul %2, %3, %cst {dimension_numbers = #tpu.dot_dimension_numbers<[1], [0], [0], [1], [0, 0, 1, 1], [], []>} : vector<32x128xbf16>, vector<128x256xbf16>, vector<32x256xf32> -> vector<32x256xf32>
    %5 = vector.shape_cast %4 : vector<32x256xf32> to vector<2x16x256xf32>
    %6 = vector.extract_strided_slice %5 {offsets = [0, 0, 0], sizes = [2, 16, 128], strides = [1, 1, 1]} : vector<2x16x256xf32> to vector<2x16x128xf32>
    %7 = math.tanh %6 : vector<2x16x128xf32>
    %8 = vector.extract_strided_slice %5 {offsets = [0, 0, 128], sizes = [2, 16, 128], strides = [1, 1, 1]} : vector<2x16x256xf32> to vector<2x16x128xf32>
    %c0_4 = arith.constant 0 : index
    %c0_5 = arith.constant 0 : index
    %9 = vector.load %arg3[%c0_4, %c0_5] : memref<2x128xf32, #tpu.memory_space<vmem>>, vector<2x128xf32>
    %10 = vector.extract_strided_slice %9 {offsets = [0, 0], sizes = [1, 128], strides = [1, 1]} : vector<2x128xf32> to vector<1x128xf32>
    %11 = vector.shape_cast %10 : vector<1x128xf32> to vector<1x1x128xf32>
    %12 = vector.extract_strided_slice %9 {offsets = [1, 0], sizes = [1, 128], strides = [1, 1]} : vector<2x128xf32> to vector<1x128xf32>
    %13 = vector.broadcast %11 : vector<1x1x128xf32> to vector<2x16x128xf32>
    %14 = arith.mulf %7, %13 : vector<2x16x128xf32>
    %cst_6 = arith.constant dense<0.000000e+00> : vector<2x16xf32>
    %15 = vector.multi_reduction <add>, %14, %cst_6 [2] : vector<2x16x128xf32> to vector<2x16xf32>
    %c0_7 = arith.constant 0 : index
    %c0_8 = arith.constant 0 : index
    %16 = vector.load %arg4[%c0_7, %c0_8] : memref<2x16xf32, #tpu.memory_space<vmem>>, vector<2x16xf32>
    %cst_9 = arith.constant 0.000000e+00 : f32
    %17 = vector.broadcast %cst_9 : f32 to vector<2x16xf32>
    %18 = arith.cmpf oeq, %16, %17 : vector<2x16xf32>
    %cst_10 = arith.constant -1.000000e+09 : f32
    %19 = vector.broadcast %cst_10 : f32 to vector<2x16xf32>
    %20 = arith.select %18, %19, %15 : vector<2x16xi1>, vector<2x16xf32>
    %cst_11 = arith.constant dense<0xFF800000> : vector<2xf32>
    %21 = vector.multi_reduction <maximumf>, %20, %cst_11 [1] : vector<2x16xf32> to vector<2xf32>
    %22 = vector.shape_cast %21 : vector<2xf32> to vector<2x1xf32>
    %23 = vector.broadcast %22 : vector<2x1xf32> to vector<2x16xf32>
    %24 = arith.subf %20, %23 : vector<2x16xf32>
    %25 = math.exp %24 : vector<2x16xf32>
    %cst_12 = arith.constant dense<0.000000e+00> : vector<2xf32>
    %26 = vector.multi_reduction <add>, %25, %cst_12 [1] : vector<2x16xf32> to vector<2xf32>
    %27 = vector.shape_cast %26 : vector<2xf32> to vector<2x1xf32>
    %28 = vector.broadcast %27 : vector<2x1xf32> to vector<2x16xf32>
    %29 = arith.divf %25, %28 : vector<2x16xf32>
    %30 = vector.shape_cast %29 : vector<2x16xf32> to vector<2x16x1xf32>
    %31 = vector.broadcast %30 : vector<2x16x1xf32> to vector<2x16x128xf32>
    %32 = arith.mulf %31, %8 : vector<2x16x128xf32>
    %cst_13 = arith.constant dense<0.000000e+00> : vector<2x128xf32>
    %33 = vector.multi_reduction <add>, %32, %cst_13 [1] : vector<2x16x128xf32> to vector<2x128xf32>
    %34 = vector.broadcast %12 : vector<1x128xf32> to vector<2x128xf32>
    %35 = arith.addf %33, %34 : vector<2x128xf32>
    %c0_14 = arith.constant 0 : index
    %c0_15 = arith.constant 0 : index
    %36 = vector.load %arg5[%c0_14, %c0_15] : memref<2x128xf32, #tpu.memory_space<vmem>>, vector<2x128xf32>
    tpu.vector_store %arg5[%c0_14, %c0_15], %35 {strides = array<i32>} : memref<2x128xf32, #tpu.memory_space<vmem>>, vector<2x128xf32>,
    %c0_16 = arith.constant 0 : index
    %c0_17 = arith.constant 0 : index
    %37 = vector.load %arg6[%c0_16, %c0_17] : memref<2x16xf32, #tpu.memory_space<vmem>>, vector<2x16xf32>
    tpu.vector_store %arg6[%c0_16, %c0_17], %29 {strides = array<i32>} : memref<2x16xf32, #tpu.memory_space<vmem>>, vector<2x16xf32>,
    return
  }
  func.func @transform_0(%arg0: i32) -> (i32, i32, i32) {
    %c0_i32 = arith.constant 0 : i32
    %c0_i32_0 = arith.constant 0 : i32
    %c0_i32_1 = arith.constant 0 : i32
    return %arg0, %c0_i32, %c0_i32_0 : i32, i32, i32
  }
  func.func @transform_1(%arg0: i32) -> (i32, i32) {
    %c0_i32 = arith.constant 0 : i32
    %c0_i32_0 = arith.constant 0 : i32
    %c0_i32_1 = arith.constant 0 : i32
    return %c0_i32, %c0_i32_0 : i32, i32
  }
  func.func @transform_2(%arg0: i32) -> (i32, i32) {
    %c0_i32 = arith.constant 0 : i32
    %c0_i32_0 = arith.constant 0 : i32
    %c0_i32_1 = arith.constant 0 : i32
    return %c0_i32, %c0_i32_0 : i32, i32
  }
  func.func @transform_3(%arg0: i32) -> (i32, i32) {
    %c0_i32 = arith.constant 0 : i32
    %c0_i32_0 = arith.constant 0 : i32
    return %arg0, %c0_i32 : i32, i32
  }
  func.func @transform_4(%arg0: i32) -> (i32, i32) {
    %c0_i32 = arith.constant 0 : i32
    %c0_i32_0 = arith.constant 0 : i32
    return %arg0, %c0_i32 : i32, i32
  }
  func.func @transform_5(%arg0: i32) -> (i32, i32) {
    %c0_i32 = arith.constant 0 : i32
    %c0_i32_0 = arith.constant 0 : i32
    return %arg0, %c0_i32 : i32, i32
  }
}

</mosaic_0001>

<llo_original>
// kernel: attentive_pooling.1
$region0: #{attentive_pooling.1}
  #allocation0 [shape = 'u32[]', space=smem, size = 0x4, offset = 0x4, fixed_abs, tag = 'smem constant byte address 0x4 - core index']
  #allocation1 [shape = 'u32[144,128]{1,0:T(1,128)}', space=vmem, size = 0x12000, scoped, tag = 'internal scratch']
  %s0 = inlined_call_operand.hbm [shape: f32[2,16,128], index: 0, kind: input, shape index: {}]
  %s1 = inlined_call_operand.hbm [shape: bf16[128,256], index: 1, kind: input, shape index: {}]
  %s2 = inlined_call_operand.hbm [shape: f32[2,128], index: 2, kind: input, shape index: {}]
  %s3 = inlined_call_operand.vmem [shape: f32[2,16], index: 3, kind: input, shape index: {}]
  %s4 = inlined_call_operand.hbm [shape: f32[2,128], index: 4, kind: output, shape index: {0}]
  %s5 = inlined_call_operand.hbm [shape: f32[2,16], index: 5, kind: output, shape index: {1}]
  %6 = xla_tuple %s4, %s5
  %s7 = sld [smem:[#allocation0]]
  $region46: #{attentive_pooling.1} parent=0
    _
  %s9 = ssub.s32 1, %s7
  %s10 = scalar_select 0, %s9, %s7
  $region1: #{attentive_pooling.1} parent=0
    #allocation2 [shape = 'u8[16384]{0}', space=vmem, size = 0x4000, scoped, tag = 'input window, operand 0, single buffered']
    #allocation3 [shape = 's32[1]{0}', space=sflag, size = 0x4, scoped, tag = 'scoped memory for attentive_pooling.1']
    #allocation4 [shape = 's32[1]{0}', space=sflag, size = 0x4, scoped, tag = 'scoped memory for attentive_pooling.1']
    #allocation5 [shape = 'u8[65536]{0}', space=vmem, size = 0x10000, scoped, tag = 'input window, operand 1, single buffered']
    #allocation6 [shape = 's32[1]{0}', space=sflag, size = 0x4, scoped, tag = 'scoped memory for attentive_pooling.1']
    #allocation7 [shape = 'u8[1024]{0}', space=vmem, size = 0x400, scoped, tag = 'input window, operand 2, single buffered']
    #allocation8 [shape = 'u8[1024]{0}', space=vmem, size = 0x400, scoped, tag = 'output window, operand 0, single buffered']
    #allocation9 [shape = 'u8[1024]{0}', space=vmem, size = 0x400, scoped, tag = 'output window, operand 1, single buffered']
    #allocation10 [shape = 's32[1]{0}', space=sflag, size = 0x4, scoped, tag = 'scoped memory for attentive_pooling.1']
    %11 = vsyncpa [#allocation3], 0
    %12 = vsyncpa [#allocation6], 0
    %13 = vsyncpa [#allocation4], 0
    %14 = vsyncpa [#allocation10], 0
    // Predicated region
    $region2: #{attentive_pooling.1} parent=1 // pred_check
      _
    $region3: #{attentive_pooling.1} parent=1 // pred_check_branch
      %16 = sbr.rel (0) target = $region5
    $region4: #{attentive_pooling.1} parent=1 // pred_region
      %s18 = ssub.s32 512, 512
      %19 = vsyncadd [#allocation3], %s18
      %s20 = sshll.u32 [#allocation2], 4
      %s21 = int_to_ptr.vmem [resolvable:$true] %s20
      %26 = dma.hbm_to_vmem [thread:$0]  %s0, 512, %s21, [#allocation3], 128, 128, 8
    $region5: #{attentive_pooling.1} parent=1 // pred_fallthru
      _
    // Predicated region
    $region6: #{attentive_pooling.1} parent=1 // pred_check
      _
    $region7: #{attentive_pooling.1} parent=1 // pred_check_branch
      %28 = sbr.rel (0) target = $region9
    $region8: #{attentive_pooling.1} parent=1 // pred_region
      %s30 = ssub.s32 2048, 2048
      %31 = vsyncadd [#allocation6], %s30
      %s32 = sshll.u32 [#allocation5], 4
      %s33 = int_to_ptr.vmem [resolvable:$true] %s32
      %38 = dma.hbm_to_vmem [thread:$0]  %s1, 2048, %s33, [#allocation6], 128, 128, 8
    $region9: #{attentive_pooling.1} parent=1 // pred_fallthru
      _
    // Predicated region
    $region10: #{attentive_pooling.1} parent=1 // pred_check
      _
    $region11: #{attentive_pooling.1} parent=1 // pred_check_branch
      %40 = sbr.rel (0) target = $region13
    $region12: #{attentive_pooling.1} parent=1 // pred_region
      %s42 = ssub.s32 32, 32
      %43 = vsyncadd [#allocation6], %s42
      %s45 = sshll.u32 [#allocation7], 4
      %s46 = int_to_ptr.vmem [resolvable:$true] %s45
      %48 = dma.hbm_to_vmem [thread:$0]  %s2, 32, %s46, [#allocation6]
    $region13: #{attentive_pooling.1} parent=1 // pred_fallthru
      _
    // Predicated region
    $region14: #{attentive_pooling.1} parent=1 // pred_check
      _
    $region15: #{attentive_pooling.1} parent=1 // pred_check_branch
      %50 = sbr.rel (0) target = $region17
    $region16: #{attentive_pooling.1} parent=1 // pred_region
      _
    $region17: #{attentive_pooling.1} parent=1 // pred_fallthru
      _
    // Predicated region
    $region18: #{attentive_pooling.1} parent=1 // pred_check
      _
    $region19: #{attentive_pooling.1} parent=1 // pred_check_branch
      %52 = sbr.rel (0) target = $region21
    $region20: #{attentive_pooling.1} parent=1 // pred_region
      %53 = dma.done [#allocation3], 512
    $region21: #{attentive_pooling.1} parent=1 // pred_fallthru
      _
    // Predicated region
    $region22: #{attentive_pooling.1} parent=1 // pred_check
      _
    $region23: #{attentive_pooling.1} parent=1 // pred_check_branch
      %55 = sbr.rel (0) target = $region25
    $region24: #{attentive_pooling.1} parent=1 // pred_region
      %56 = dma.done [#allocation6], 2048
    $region25: #{attentive_pooling.1} parent=1 // pred_fallthru
      _
    // Predicated region
    $region26: #{attentive_pooling.1} parent=1 // pred_check
      _
    $region27: #{attentive_pooling.1} parent=1 // pred_check_branch
      %58 = sbr.rel (0) target = $region29
    $region28: #{attentive_pooling.1} parent=1 // pred_region
      %59 = dma.done [#allocation6], 32
    $region29: #{attentive_pooling.1} parent=1 // pred_fallthru
      _
    %v61 = vld [vmem:[#allocation2] sm:$0xff]
    %v62 = vld [vmem:[#allocation2 + $0x8] sm:$0xff]
    %v63 = vld [vmem:[#allocation2 + $0x10] sm:$0xff]
    %v64 = vld [vmem:[#allocation2 + $0x18] sm:$0xff]
    %v65 = vpack.c.bf16 %v62, %v61
    %v66 = vpack.c.bf16 %v64, %v63
    %v67 = vld [vmem:[#allocation5] sm:$0xff]
    %v68 = vld [vmem:[#allocation5 + $0x8] sm:$0xff]
    %v69 = vld [vmem:[#allocation5 + $0x10] sm:$0xff]
    %v70 = vld [vmem:[#allocation5 + $0x18] sm:$0xff]
    %v71 = vld [vmem:[#allocation5 + $0x20] sm:$0xff]
    %v72 = vld [vmem:[#allocation5 + $0x28] sm:$0xff]
    %v73 = vld [vmem:[#allocation5 + $0x30] sm:$0xff]
    %v74 = vld [vmem:[#allocation5 + $0x38] sm:$0xff]
    %v75 = vld [vmem:[#allocation5 + $0x40] sm:$0xff]
    %v76 = vld [vmem:[#allocation5 + $0x48] sm:$0xff]
    %v77 = vld [vmem:[#allocation5 + $0x50] sm:$0xff]
    %v78 = vld [vmem:[#allocation5 + $0x58] sm:$0xff]
    %v79 = vld [vmem:[#allocation5 + $0x60] sm:$0xff]
    %v80 = vld [vmem:[#allocation5 + $0x68] sm:$0xff]
    %v81 = vld [vmem:[#allocation5 + $0x70] sm:$0xff]
    %v82 = vld [vmem:[#allocation5 + $0x78] sm:$0xff]
    %v99 = vunpack.c.l.b16 %v67
    %v100 = vunpack.c.h.b16 %v67
    %v101 = vunpack.c.l.b16 %v68
    %v102 = vunpack.c.h.b16 %v68
    %v103 = vunpack.c.l.b16 %v69
    %v104 = vunpack.c.h.b16 %v69
    %v105 = vunpack.c.l.b16 %v70
    %v106 = vunpack.c.h.b16 %v70
    %v107 = vunpack.c.l.b16 %v71
    %v108 = vunpack.c.h.b16 %v71
    %v109 = vunpack.c.l.b16 %v72
    %v110 = vunpack.c.h.b16 %v72
    %v111 = vunpack.c.l.b16 %v73
    %v112 = vunpack.c.h.b16 %v73
    %v113 = vunpack.c.l.b16 %v74
    %v114 = vunpack.c.h.b16 %v74
    %v115 = vunpack.c.l.b16 %v75
    %v116 = vunpack.c.h.b16 %v75
    %v117 = vunpack.c.l.b16 %v76
    %v118 = vunpack.c.h.b16 %v76
    %v119 = vunpack.c.l.b16 %v77
    %v120 = vunpack.c.h.b16 %v77
    %v121 = vunpack.c.l.b16 %v78
    %v122 = vunpack.c.h.b16 %v78
    %v123 = vunpack.c.l.b16 %v79
    %v124 = vunpack.c.h.b16 %v79
    %v125 = vunpack.c.l.b16 %v80
    %v126 = vunpack.c.h.b16 %v80
    %v127 = vunpack.c.l.b16 %v81
    %v128 = vunpack.c.h.b16 %v81
    %v129 = vunpack.c.l.b16 %v82
    %v130 = vunpack.c.h.b16 %v82
    %v131 = vpack.c.b16 %v101, %v99
    %v132 = vpack.c.b16 %v102, %v100
    %v133 = vpack.c.b16 %v105, %v103
    %v134 = vpack.c.b16 %v106, %v104
    %v135 = vpack.c.b16 %v109, %v107
    %v136 = vpack.c.b16 %v110, %v108
    %v137 = vpack.c.b16 %v113, %v111
    %v138 = vpack.c.b16 %v114, %v112
    %v139 = vpack.c.b16 %v117, %v115
    %v140 = vpack.c.b16 %v118, %v116
    %v141 = vpack.c.b16 %v121, %v119
    %v142 = vpack.c.b16 %v122, %v120
    %v143 = vpack.c.b16 %v125, %v123
    %v144 = vpack.c.b16 %v126, %v124
    %v145 = vpack.c.b16 %v129, %v127
    %v146 = vpack.c.b16 %v130, %v128
    %163 = vmatprep.subr.bf16.mxu0 %v132
    %164 = vmatpush1.bf16.msra.mxu0 %v131
    %165 = vmatprep.subr.bf16.mxu0 %v134
    %166 = vmatpush1.bf16.msra.mxu0 %v133
    %167 = vmatprep.subr.bf16.mxu0 %v136
    %168 = vmatpush1.bf16.msra.mxu0 %v135
    %169 = vmatprep.subr.bf16.mxu0 %v138
    %170 = vmatpush1.bf16.msra.mxu0 %v137
    %171 = vmatprep.subr.bf16.mxu0 %v140
    %172 = vmatpush1.bf16.msra.mxu0 %v139
    %173 = vmatprep.subr.bf16.mxu0 %v142
    %174 = vmatpush1.bf16.msra.mxu0 %v141
    %175 = vmatprep.subr.bf16.mxu0 %v144
    %176 = vmatpush1.bf16.msra.mxu0 %v143
    %177 = vmatprep.subr.bf16.mxu0 %v146
    %178 = vmatpush1.bf16.msra.mxu0 %v145
    %179 = vmatprep.subr.bf16.mxu0 0
    %180 = vmatpush1.bf16.msra.mxu0 0
    %181 = vmatprep.subr.bf16.mxu0 0
    %182 = vmatpush1.bf16.msra.mxu0 0
    %183 = vmatprep.subr.bf16.mxu0 0
    %184 = vmatpush1.bf16.msra.mxu0 0
    %185 = vmatprep.subr.bf16.mxu0 0
    %186 = vmatpush1.bf16.msra.mxu0 0
    %187 = vmatprep.subr.bf16.mxu0 0
    %188 = vmatpush1.bf16.msra.mxu0 0
    %189 = vmatprep.subr.bf16.mxu0 0
    %190 = vmatpush1.bf16.msra.mxu0 0
    %191 = vmatprep.subr.bf16.mxu0 0
    %192 = vmatpush1.bf16.msra.mxu0 0
    %193 = vmatprep.subr.bf16.mxu0 0
    %194 = vmatpush1.bf16.msra.mxu0 0
    %195 = vmatprep.mubr.bf16.mxu0 0
    %196 = vmatmul.mubr.bf16.gmra.mrb[0].mxu0 %v65
    %v197 = vpop.f32.mrb[0].mxu0
    %v198 = vadd.f32 0.0, %v197
    %v199 = vpop.f32.mrb[0].mxu0
    %v200 = vadd.f32 0.0, %v199
    %v201 = vpop.f32.mrb[0].mxu0
    %v202 = vadd.f32 0.0, %v201
    %v203 = vpop.f32.mrb[0].mxu0
    %v204 = vadd.f32 0.0, %v203
    %205 = vmatprep.mubr.bf16.mxu0 0
    %206 = vmatmul.mubr.bf16.gmra.mrb[0].mxu0 %v66
    %v207 = vpop.f32.mrb[0].mxu0
    %v208 = vadd.f32 0.0, %v207
    %v209 = vpop.f32.mrb[0].mxu0
    %v210 = vadd.f32 0.0, %v209
    %v211 = vpop.f32.mrb[0].mxu0
    %v212 = vadd.f32 0.0, %v211
    %v213 = vpop.f32.mrb[0].mxu0
    %v214 = vadd.f32 0.0, %v213
    %215 = vdwg.mxu0
    %v216 = vtanh.pop %v198
    %v217 = vtanh.pop %v202
    %v218 = vtanh.pop %v208
    %v219 = vtanh.pop %v212
    %v220 = vld [vmem:[#allocation7] sm:$0x3]
    %v221 = vlaneseq
    %v222 = vshrl.u32 %v221, 7
    %v223 = vsub.s32 0, %v222
    %v224 = vrot.slane %v220, %v223
    %v225 = vmul.f32 %v216, %v224
    %v226 = vmul.f32 %v217, %v224
    %v227 = vmul.f32 %v218, %v224
    %v228 = vmul.f32 %v219, %v224
    %229 = vadd.xlane.f32.xlu0 %v225
    %v230 = vpop.xlane.xlu0 %229
    %231 = vadd.xlane.f32.xlu0 %v226
    %v232 = vpop.xlane.xlu0 %231
    %233 = vadd.xlane.f32.xlu0 %v227
    %v234 = vpop.xlane.xlu0 %233
    %235 = vadd.xlane.f32.xlu0 %v228
    %v236 = vpop.xlane.xlu0 %235
    %v237 = vld [vmem:[%s3] sm:$0x3]
    %vm238 = vcmp.eq.f32.partialorder %v237, 0.0
    %v243 = vlaneseq
    %v244 = vand.u32 %v243, 127
    %v245 = vlaneseq
    %v246 = vshrl.u32 %v245, 7
    %v247 = vsub.s32 %v244, %v246
    %v248 = vrot.slane %v230, %v247
    %v249 = vadd.s32 %v244, 4294967288
    %v250 = vlaneseq
    %v251 = vshrl.u32 %v250, 7
    %v252 = vsub.s32 %v249, %v251
    %v253 = vrot.slane %v232, %v252
    %vm254 = vcmask 130112
    %v255 = vsel %vm254, %v253, %v248
    %v256 = vlaneseq
    %v257 = vshrl.u32 %v256, 7
    %v258 = vsub.s32 %v244, %v257
    %v259 = vrot.slane %v234, %v258
    %v260 = vlaneseq
    %v261 = vshrl.u32 %v260, 7
    %v262 = vsub.s32 %v249, %v261
    %v263 = vrot.slane %v236, %v262
    %v264 = vsel %vm254, %v263, %v259
    %vm265 = vcmask 1041409
    %v266 = vsel %vm265, %v264, %v255
    %v268 = vsel %vm238, -1e+09, %v266
    %vm269 = vcmask 123904
    %v270 = vsel %vm269, %v268, -inf
    %271 = vmax.xlane.f32.xlu0 %v270
    %v272 = vpop.xlane.xlu0 %271
    %v273 = vsub.f32 %v268, %v272
    %v274 = vmul.f32 %v273, 1.442695
    %v275 = vpow.pop %v274
    %v276 = vsel %vm269, %v275, 0.0
    %277 = vadd.xlane.f32.xlu0 %v276
    %v278 = vpop.xlane.xlu0 %277
    %v279 = vrcp.pop %v278
    %v280 = vmul.f32 %v275, %v279
    %v281 = vlaneseq
    %v282 = vshrl.u32 %v281, 7
    %v283 = vsub.s32 0, %v282
    %v284 = vrot.slane %v280, %v283
    %286 = vbcast.lane.b32.xlu0 %v284, 256
    %v287 = vpop.permute.xlu0 %286
    %s289 = sor.u32 256, 8
    %290 = vbcast.lane.b32.xlu0 %v284, %s289
    %v291 = vpop.permute.xlu0 %290
    %v292 = vlaneseq
    %v293 = vshrl.u32 %v292, 7
    %v294 = vsub.s32 1, %v293
    %v295 = vrot.slane %v280, %v294
    %297 = vbcast.lane.b32.xlu0 %v295, 256
    %v298 = vpop.permute.xlu0 %297
    %s300 = sor.u32 256, 8
    %301 = vbcast.lane.b32.xlu0 %v295, %s300
    %v302 = vpop.permute.xlu0 %301
    %v303 = vmul.f32 %v287, %v200
    %v304 = vmul.f32 %v291, %v204
    %v305 = vmul.f32 %v298, %v210
    %v306 = vmul.f32 %v302, %v214
    %v307 = vadd.f32 %v303, %v304
    %v308 = vrot.slane %v307, 4
    %v309 = vadd.f32 %v307, %v308
    %v310 = vrot.slane %v309, 2
    %v311 = vadd.f32 %v309, %v310
    %v312 = vrot.slane %v311, 1
    %v313 = vadd.f32 %v311, %v312
    %v314 = vadd.f32 %v305, %v306
    %v315 = vrot.slane %v314, 4
    %v316 = vadd.f32 %v314, %v315
    %v317 = vrot.slane %v316, 2
    %v318 = vadd.f32 %v316, %v317
    %v319 = vrot.slane %v318, 1
    %v320 = vadd.f32 %v318, %v319
    %v321 = vlaneseq
    %v322 = vshrl.u32 %v321, 7
    %v323 = vsub.s32 1, %v322
    %v324 = vrot.slane %v220, %v323
    %v325 = vadd.f32 %v313, %v324
    %v326 = vadd.f32 %v320, %v324
    %v329 = vrot.slane %v326, 7
    %v330 = vsel %vm265, %v329, %v325
    %332 = vst [vmem:[#allocation8] sm:$0x3] %v330
    %333 = vst.msk [vmem:[#allocation9] sm:$0x3] %vm269, %v280
    // Predicated region
    $region30: #{attentive_pooling.1} parent=1 // pred_check
      _
    $region31: #{attentive_pooling.1} parent=1 // pred_check_branch
      %335 = sbr.rel (0) target = $region33
    $region32: #{attentive_pooling.1} parent=1 // pred_region
      %s337 = ssub.s32 32, 32
      %338 = vsyncadd [#allocation4], %s337
      %s340 = sshll.u32 [#allocation8], 4
      %s341 = int_to_ptr.vmem [resolvable:$true] %s340
      %343 = dma.vmem_to_hbm [thread:$0]  %s341, 32, %s4, [#allocation4]
    $region33: #{attentive_pooling.1} parent=1 // pred_fallthru
      _
    // Predicated region
    $region34: #{attentive_pooling.1} parent=1 // pred_check
      _
    $region35: #{attentive_pooling.1} parent=1 // pred_check_branch
      %345 = sbr.rel (0) target = $region37
    $region36: #{attentive_pooling.1} parent=1 // pred_region
      %s347 = ssub.s32 32, 32
      %348 = vsyncadd [#allocation10], %s347
      %s350 = sshll.u32 [#allocation9], 4
      %s351 = int_to_ptr.vmem [resolvable:$true] %s350
      %353 = dma.vmem_to_hbm [thread:$0]  %s351, 32, %s5, [#allocation10]
    $region37: #{attentive_pooling.1} parent=1 // pred_fallthru
      _
    // Predicated region
    $region38: #{attentive_pooling.1} parent=1 // pred_check
      _
    $region39: #{attentive_pooling.1} parent=1 // pred_check_branch
      %355 = sbr.rel (0) target = $region41
    $region40: #{attentive_pooling.1} parent=1 // pred_region
      %356 = dma.done [#allocation4], 32
    $region41: #{attentive_pooling.1} parent=1 // pred_fallthru
      _
    // Predicated region
    $region42: #{attentive_pooling.1} parent=1 // pred_check
      _
    $region43: #{attentive_pooling.1} parent=1 // pred_check_branch
      %358 = sbr.rel (0) target = $region45
    $region44: #{attentive_pooling.1} parent=1 // pred_region
      %359 = dma.done [#allocation10], 32
    $region45: #{attentive_pooling.1} parent=1 // pred_fallthru
      _
    %360 = vsyncpa [#allocation3], 1
    %361 = vsyncpa [#allocation6], 1
    %362 = vsyncpa [#allocation4], 1
    %363 = vsyncpa [#allocation10], 1

</llo_original>
